<compile_context>
chip_gen: v7x
topology: tpu7x:2x2x1
jax: 0.10.0
libtpu: 0.0.40
codegen_flags: <defaults>
</compile_context>

<pallas_src>
import functools

import jax
import jax.numpy as jnp
from jax import lax
from jax.experimental import pallas as pl
from jax.experimental.pallas import tpu as pltpu


def _round_up(a, b):
    return (a + b - 1) // b * b


def rbf_kernel(x_ref, c_ref, p_ref, out_ref):
    # x: (TN, F) f32, c_scaled: (Hpad, F) f32,
    # p: (8, Hpad) f32 [row 0 = beta, row 1 = ninv, row 2 = w], out: (1, TN) f32.
    x = x_ref[...]

    # MXU: x . c_scaled^T, contracting the feature axis of both operands
    # (no transpose materialized in VMEM).
    xc = lax.dot_general(x, c_ref[...],
                         dimension_numbers=(((1,), (1,)), ((), ())),
                         preferred_element_type=jnp.float32)          # (TN, Hpad)

    # ||x||^2 per row (XLU reduction, off the VALU critical chain).
    x2 = jnp.sum(x * x, axis=1, keepdims=True)                        # (TN, 1)

    beta = p_ref[0:1, :]        # -||c||^2 / (2 sigma^2)               (1, Hpad)
    ninv = p_ref[1:2, :]        # -1 / (2 sigma^2)                     (1, Hpad)
    w = p_ref[2:3, :]           # output weights (+ intercept at col H) (1, Hpad)

    # e = -||x - c||^2 / (2 sigma^2); clamp at 0 because cancellation in the
    # expanded form can produce tiny positives while the true value is <= 0.
    e = xc + beta + x2 * ninv                                         # (TN, Hpad)
    hi = jnp.exp(jnp.minimum(e, 0.0))                                 # (TN, Hpad)

    # (1, Hpad) x (TN, Hpad) -> (1, TN): lane-dense output row.  The intercept
    # column of hi is exactly 1 (its beta/ninv/center rows are 0) so the bias
    # w[H] is already included; zero-weight pad columns contribute nothing.
    y = lax.dot_general(w, hi,
                        dimension_numbers=(((1,), (1,)), ((), ())),
                        preferred_element_type=jnp.float32)           # (1, TN)
    out_ref[...] = y


@functools.partial(jax.jit, static_argnames=("tn",))
def rbf_forward(x, c, sigma, w, *, tn=1024):
    """x: (N, F); c: (H, F); sigma: (H, 1); w: (H+1, 1) -> (N, 1) float32."""
    N, F = x.shape
    H = c.shape[0]

    # Lane-pad the hidden dimension (+1 for the intercept column).
    hpad = _round_up(H + 1, 128)

    # Row tiling over N:
    #   * N <= 128: single tile; the output block's last dim equals the full
    #     array dim, so a multiple of 8 is layout-legal.
    #   * N  > 128: at least 2 tiles (v7x megacore), balanced across the grid
    #     to minimize padded rows; each tile is a multiple of 128 lanes.
    if N <= 128:
        tn_eff = _round_up(N, 8)
    else:
        n_tiles = max(pl.cdiv(N, tn), 2)
        tn_eff = _round_up(pl.cdiv(N, n_tiles), 128)
    n_pad = _round_up(N, tn_eff)
    grid = (n_pad // tn_eff,)

    # --- Parameter prep (done once, outside the grid) -----------------------
    cf = c.astype(jnp.float32)
    sig2 = jnp.square(sigma[:, 0].astype(jnp.float32))                # (H,)
    inv_s2 = 1.0 / sig2                                               # (H,)
    ninv = -0.5 * inv_s2                                              # (H,)
    c2 = jnp.sum(cf * cf, axis=1)                                     # (H,)
    beta = ninv * c2                                                  # (H,)

    # Centers with the per-hidden 1/sigma^2 scale folded in.
    c_scaled = cf * inv_s2[:, None]                                   # (H, F)
    c_pad = jnp.zeros((hpad, F), jnp.float32).at[:H].set(c_scaled)

    # Pack beta / ninv / w into one sublane-aligned (8, Hpad) slab (single
    # resident DMA stream instead of three).  Intercept + pad columns keep
    # beta = ninv = 0 so hi == exp(0) == 1 there; weights beyond H+1 are 0.
    wf = w.astype(jnp.float32)
    params = jnp.zeros((8, hpad), jnp.float32)
    params = params.at[0, :H].set(beta)
    params = params.at[1, :H].set(ninv)
    params = params.at[2, :H].set(wf[:H, 0])
    params = params.at[2, H].set(wf[H, 0])          # intercept weight

    # Keep x in f32: the 2e-4-level accuracy target rules out bf16 for the
    # expanded-distance matmul (cancellation); v5e's VPU/EUP are f32-only too.
    xf = x.astype(jnp.float32)
    x_p = xf if n_pad == N else jnp.zeros((n_pad, F), jnp.float32).at[:N].set(xf)

    cost = pl.CostEstimate(
        flops=2 * n_pad * hpad * (F + 2),
        transcendentals=n_pad * hpad,
        bytes_accessed=(n_pad * F + hpad * F + 8 * hpad + n_pad) * 4,
    )

    out_row = pl.pallas_call(
        rbf_kernel,
        out_shape=jax.ShapeDtypeStruct((1, n_pad), jnp.float32),
        grid=grid,
        in_specs=[
            pl.BlockSpec((tn_eff, F), lambda i: (i, 0)),              # x row tiles
            pl.BlockSpec((hpad, F), lambda i: (0, 0),
                         pipeline_mode=pl.Buffered(1)),               # scaled centers
            pl.BlockSpec((8, hpad), lambda i: (0, 0),
                         pipeline_mode=pl.Buffered(1)),               # packed params
        ],
        out_specs=pl.BlockSpec((1, tn_eff), lambda i: (0, i)),
        compiler_params=pltpu.CompilerParams(
            dimension_semantics=("parallel",),
            vmem_limit_bytes=64 * 1024 * 1024,
        ),
        cost_estimate=cost,
    )(x_p, c_pad, params)

    return out_row.reshape(n_pad, 1)[:N]


def rbf_reference(x, c, sigma, w):
    # Pure-JAX reference mirroring the PyTorch forward.
    d2 = jnp.sum((x[:, None, :] - c[None, :, :]) ** 2, axis=-1)       # (N, H)
    hi = jnp.exp(-d2 / (2.0 * (sigma[:, 0] ** 2)[None, :]))           # (N, H)
    yi_in = jnp.concatenate([hi, jnp.ones((x.shape[0], 1), x.dtype)], axis=1)
    return yi_in @ w


if __name__ == "__main__":
    # Small shapes consistent with the module: n_samples=8, features=32, hidden=16.
    N, F, H = 8, 32, 16
    key = jax.random.PRNGKey(0)
    kx, kw, kc, ks, kx2 = jax.random.split(key, 5)

    x = jax.random.normal(kx, (N, F), dtype=jnp.float32)
    # Parameters (same shapes as the nn.Parameters in __init__).
    w = jax.random.normal(kw, (H + 1, 1), dtype=jnp.float32)
    c = jax.random.normal(kc, (H, F), dtype=jnp.float32)
    sigma = jax.random.normal(ks, (H, 1), dtype=jnp.float32)

    out = jax.block_until_ready(rbf_forward(x, c, sigma, w))
    ref = rbf_reference(x, c, sigma, w)
    assert out.shape == (N, 1)
    assert jnp.allclose(out, ref, atol=5e-4, rtol=5e-4), (out, ref)

    # Multi-tile / megacore path: grid of 2 balanced, lane-aligned row tiles.
    N2 = 300
    x_big = jax.random.normal(kx2, (N2, F), dtype=jnp.float32)
    out2 = jax.block_until_ready(rbf_forward(x_big, c, sigma, w))
    ref2 = rbf_reference(x_big, c, sigma, w)
    assert out2.shape == (N2, 1)
    assert jnp.allclose(out2, ref2, atol=5e-4, rtol=5e-4)

    print("KERNEL_OK")
</pallas_src>

<mosaic_0001>
module attributes {stable_mosaic.version = 11 : i64} {
  func.func @rbf_kernel(%arg0: i32, %arg1: memref<8x32xf32, #tpu.memory_space<vmem>>, %arg2: memref<128x32xf32, #tpu.memory_space<vmem>>, %arg3: memref<8x128xf32, #tpu.memory_space<vmem>>, %arg4: memref<1x8xf32, #tpu.memory_space<vmem>>) attributes {dimension_semantics = [#tpu.dimension_semantics<parallel>], iteration_bounds = array<i64: 1>, scalar_prefetch = 0 : i64, scratch_operands = 0 : i64, tpu.core_type = #tpu.core_type<tc>, window_params = [{transform_indices = @transform_0, window_bounds = array<i64: 8, 32>}, {pipeline_mode = #tpu.pipeline_mode<synchronous>, transform_indices = @transform_1, window_bounds = array<i64: 128, 32>}, {pipeline_mode = #tpu.pipeline_mode<synchronous>, transform_indices = @transform_2, window_bounds = array<i64: 8, 128>}, {transform_indices = @transform_3, window_bounds = array<i64: 1, 8>}]} {
    %c0 = arith.constant 0 : index
    %c0_0 = arith.constant 0 : index
    %0 = vector.load %arg1[%c0, %c0_0] : memref<8x32xf32, #tpu.memory_space<vmem>>, vector<8x32xf32>
    %c0_1 = arith.constant 0 : index
    %c0_2 = arith.constant 0 : index
    %1 = vector.load %arg2[%c0_1, %c0_2] : memref<128x32xf32, #tpu.memory_space<vmem>>, vector<128x32xf32>
    %cst = arith.constant dense<0.000000e+00> : vector<8x128xf32>
    %2 = tpu.matmul %0, %1, %cst {dimension_numbers = #tpu.dot_dimension_numbers<[1], [1], [0], [0], [0, 0, 1, 0], [], []>} : vector<8x32xf32>, vector<128x32xf32>, vector<8x128xf32> -> vector<8x128xf32>
    %3 = arith.mulf %0, %0 : vector<8x32xf32>
    %cst_3 = arith.constant dense<0.000000e+00> : vector<8xf32>
    %4 = vector.multi_reduction <add>, %3, %cst_3 [1] : vector<8x32xf32> to vector<8xf32>
    %5 = vector.shape_cast %4 : vector<8xf32> to vector<8x1xf32>
    %c0_4 = arith.constant 0 : index
    %c0_5 = arith.constant 0 : index
    %6 = vector.load %arg3[%c0_4, %c0_5] : memref<8x128xf32, #tpu.memory_space<vmem>>, vector<1x128xf32>
    %c1 = arith.constant 1 : index
    %c0_6 = arith.constant 0 : index
    %7 = vector.load %arg3[%c1, %c0_6] : memref<8x128xf32, #tpu.memory_space<vmem>>, vector<1x128xf32>
    %c2 = arith.constant 2 : index
    %c0_7 = arith.constant 0 : index
    %8 = vector.load %arg3[%c2, %c0_7] : memref<8x128xf32, #tpu.memory_space<vmem>>, vector<1x128xf32>
    %9 = vector.broadcast %6 : vector<1x128xf32> to vector<8x128xf32>
    %10 = arith.addf %2, %9 : vector<8x128xf32>
    %11 = vector.broadcast %5 : vector<8x1xf32> to vector<8x128xf32>
    %12 = vector.broadcast %7 : vector<1x128xf32> to vector<8x128xf32>
    %13 = arith.mulf %11, %12 : vector<8x128xf32>
    %14 = arith.addf %10, %13 : vector<8x128xf32>
    %cst_8 = arith.constant 0.000000e+00 : f32
    %15 = vector.broadcast %cst_8 : f32 to vector<8x128xf32>
    %16 = arith.minimumf %14, %15 : vector<8x128xf32>
    %17 = math.exp %16 : vector<8x128xf32>
    %cst_9 = arith.constant dense<0.000000e+00> : vector<1x8xf32>
    %18 = tpu.matmul %8, %17, %cst_9 {dimension_numbers = #tpu.dot_dimension_numbers<[1], [1], [0], [0], [0, 0, 1, 0], [], []>} : vector<1x128xf32>, vector<8x128xf32>, vector<1x8xf32> -> vector<1x8xf32>
    %c0_10 = arith.constant 0 : index
    %c0_11 = arith.constant 0 : index
    %19 = vector.load %arg4[%c0_10, %c0_11] : memref<1x8xf32, #tpu.memory_space<vmem>>, vector<1x8xf32>
    tpu.vector_store %arg4[%c0_10, %c0_11], %18 {strides = array<i32>} : memref<1x8xf32, #tpu.memory_space<vmem>>, vector<1x8xf32>,
    return
  }
  func.func @transform_0(%arg0: i32) -> (i32, i32) {
    %c0_i32 = arith.constant 0 : i32
    %c0_i32_0 = arith.constant 0 : i32
    return %arg0, %c0_i32 : i32, i32
  }
  func.func @transform_1(%arg0: i32) -> (i32, i32) {
    %c0_i32 = arith.constant 0 : i32
    %c0_i32_0 = arith.constant 0 : i32
    %c0_i32_1 = arith.constant 0 : i32
    return %c0_i32, %c0_i32_0 : i32, i32
  }
  func.func @transform_2(%arg0: i32) -> (i32, i32) {
    %c0_i32 = arith.constant 0 : i32
    %c0_i32_0 = arith.constant 0 : i32
    %c0_i32_1 = arith.constant 0 : i32
    return %c0_i32, %c0_i32_0 : i32, i32
  }
  func.func @transform_3(%arg0: i32) -> (i32, i32) {
    %c0_i32 = arith.constant 0 : i32
    %c0_i32_0 = arith.constant 0 : i32
    return %c0_i32, %arg0 : i32, i32
  }
}

</mosaic_0001>

<llo_original>
// kernel: rbf_forward.1
$region0: #{rbf_forward.1}
  #allocation0 [shape = 'u32[]', space=smem, size = 0x4, offset = 0x4, fixed_abs, tag = 'smem constant byte address 0x4 - core index']
  #allocation1 [shape = 'u32[144,128]{1,0:T(1,128)}', space=vmem, size = 0x12000, scoped, tag = 'internal scratch']
  %s0 = inlined_call_operand.hbm [shape: f32[8,32], index: 0, kind: input, shape index: {}]
  %s1 = inlined_call_operand.hbm [shape: f32[128,32], index: 1, kind: input, shape index: {}]
  %s2 = inlined_call_operand.hbm [shape: f32[8,128], index: 2, kind: input, shape index: {}]
  %s3 = inlined_call_operand.hbm [shape: f32[1,8], index: 3, kind: output, shape index: {}]
  %s4 = sld [smem:[#allocation0]]
  $region34: #{rbf_forward.1} parent=0
    _
  %s6 = ssub.s32 1, %s4
  %s7 = scalar_select 0, %s6, %s4
  $region1: #{rbf_forward.1} parent=0
    #allocation2 [shape = 'u8[4096]{0}', space=vmem, size = 0x1000, scoped, tag = 'input window, operand 0, single buffered']
    #allocation3 [shape = 's32[1]{0}', space=sflag, size = 0x4, scoped, tag = 'scoped memory for rbf_forward.1']
    #allocation4 [shape = 's32[1]{0}', space=sflag, size = 0x4, scoped, tag = 'scoped memory for rbf_forward.1']
    #allocation5 [shape = 'u8[65536]{0}', space=vmem, size = 0x10000, scoped, tag = 'input window, operand 1, single buffered']
    #allocation6 [shape = 's32[1]{0}', space=sflag, size = 0x4, scoped, tag = 'scoped memory for rbf_forward.1']
    #allocation7 [shape = 'u8[4096]{0}', space=vmem, size = 0x1000, scoped, tag = 'input window, operand 2, single buffered']
    #allocation8 [shape = 'u8[512]{0}', space=vmem, size = 0x400, scoped, tag = 'output window, operand 0, single buffered']
    %8 = vsyncpa [#allocation3], 0
    %9 = vsyncpa [#allocation6], 0
    %10 = vsyncpa [#allocation4], 0
    // Predicated region
    $region2: #{rbf_forward.1} parent=1 // pred_check
      _
    $region3: #{rbf_forward.1} parent=1 // pred_check_branch
      %12 = sbr.rel (0) target = $region5
    $region4: #{rbf_forward.1} parent=1 // pred_region
      %s14 = ssub.s32 128, 128
      %15 = vsyncadd [#allocation3], %s14
      %s17 = sshll.u32 [#allocation2], 4
      %s18 = int_to_ptr.vmem [resolvable:$true] %s17
      %20 = dma.hbm_to_vmem [thread:$0]  %s0, 128, %s18, [#allocation3]
    $region5: #{rbf_forward.1} parent=1 // pred_fallthru
      _
    // Predicated region
    $region6: #{rbf_forward.1} parent=1 // pred_check
      _
    $region7: #{rbf_forward.1} parent=1 // pred_check_branch
      %22 = sbr.rel (0) target = $region9
    $region8: #{rbf_forward.1} parent=1 // pred_region
      %s24 = ssub.s32 2048, 2048
      %25 = vsyncadd [#allocation6], %s24
      %s26 = sshll.u32 [#allocation5], 4
      %s27 = int_to_ptr.vmem [resolvable:$true] %s26
      %32 = dma.hbm_to_vmem [thread:$0]  %s1, 2048, %s27, [#allocation6], 128, 128, 8
    $region9: #{rbf_forward.1} parent=1 // pred_fallthru
      _
    // Predicated region
    $region10: #{rbf_forward.1} parent=1 // pred_check
      _
    $region11: #{rbf_forward.1} parent=1 // pred_check_branch
      %34 = sbr.rel (0) target = $region13
    $region12: #{rbf_forward.1} parent=1 // pred_region
      %s36 = ssub.s32 128, 128
      %37 = vsyncadd [#allocation6], %s36
      %s39 = sshll.u32 [#allocation7], 4
      %s40 = int_to_ptr.vmem [resolvable:$true] %s39
      %42 = dma.hbm_to_vmem [thread:$0]  %s2, 128, %s40, [#allocation6]
    $region13: #{rbf_forward.1} parent=1 // pred_fallthru
      _
    // Predicated region
    $region14: #{rbf_forward.1} parent=1 // pred_check
      _
    $region15: #{rbf_forward.1} parent=1 // pred_check_branch
      %44 = sbr.rel (0) target = $region17
    $region16: #{rbf_forward.1} parent=1 // pred_region
      %45 = dma.done [#allocation3], 128
    $region17: #{rbf_forward.1} parent=1 // pred_fallthru
      _
    // Predicated region
    $region18: #{rbf_forward.1} parent=1 // pred_check
      _
    $region19: #{rbf_forward.1} parent=1 // pred_check_branch
      %47 = sbr.rel (0) target = $region21
    $region20: #{rbf_forward.1} parent=1 // pred_region
      %48 = dma.done [#allocation6], 2048
    $region21: #{rbf_forward.1} parent=1 // pred_fallthru
      _
    // Predicated region
    $region22: #{rbf_forward.1} parent=1 // pred_check
      _
    $region23: #{rbf_forward.1} parent=1 // pred_check_branch
      %50 = sbr.rel (0) target = $region25
    $region24: #{rbf_forward.1} parent=1 // pred_region
      %51 = dma.done [#allocation6], 128
    $region25: #{rbf_forward.1} parent=1 // pred_fallthru
      _
    %v52 = vld [vmem:[#allocation2] sm:$0xff]
    %v53 = vld [vmem:[#allocation5] sm:$0xff]
    %v54 = vld [vmem:[#allocation5 + $0x8] sm:$0xff]
    %v55 = vld [vmem:[#allocation5 + $0x10] sm:$0xff]
    %v56 = vld [vmem:[#allocation5 + $0x18] sm:$0xff]
    %v57 = vld [vmem:[#allocation5 + $0x20] sm:$0xff]
    %v58 = vld [vmem:[#allocation5 + $0x28] sm:$0xff]
    %v59 = vld [vmem:[#allocation5 + $0x30] sm:$0xff]
    %v60 = vld [vmem:[#allocation5 + $0x38] sm:$0xff]
    %v61 = vld [vmem:[#allocation5 + $0x40] sm:$0xff]
    %v62 = vld [vmem:[#allocation5 + $0x48] sm:$0xff]
    %v63 = vld [vmem:[#allocation5 + $0x50] sm:$0xff]
    %v64 = vld [vmem:[#allocation5 + $0x58] sm:$0xff]
    %v65 = vld [vmem:[#allocation5 + $0x60] sm:$0xff]
    %v66 = vld [vmem:[#allocation5 + $0x68] sm:$0xff]
    %v67 = vld [vmem:[#allocation5 + $0x70] sm:$0xff]
    %v68 = vld [vmem:[#allocation5 + $0x78] sm:$0xff]
    %v69 = vmul.f32 %v52, %v52
    %vm70 = vcmask 261120
    %v71 = vsel %vm70, %v69, 0.0
    %72 = vadd.xlane.f32.xlu0 %v71
    %v73 = vpop.xlane.xlu0 %72
    %v74 = vld [vmem:[#allocation7] sm:$0x1]
    %v75 = vld [vmem:[#allocation7 + $0x1] sm:$0x1]
    %v76 = vld [vmem:[#allocation7 + $0x2] sm:$0x1]
    %v77 = vlaneseq
    %v78 = vshrl.u32 %v77, 7
    %v79 = vsub.s32 0, %v78
    %v80 = vrot.slane %v74, %v79
    %v82 = vsel %vm70, %v52, 0
    %v85 = vsel %vm70, %v53, 0
    %v88 = vsel %vm70, %v54, 0
    %v91 = vsel %vm70, %v55, 0
    %v94 = vsel %vm70, %v56, 0
    %v97 = vsel %vm70, %v57, 0
    %v100 = vsel %vm70, %v58, 0
    %v103 = vsel %vm70, %v59, 0
    %v106 = vsel %vm70, %v60, 0
    %v109 = vsel %vm70, %v61, 0
    %v112 = vsel %vm70, %v62, 0
    %v115 = vsel %vm70, %v63, 0
    %v118 = vsel %vm70, %v64, 0
    %v121 = vsel %vm70, %v65, 0
    %v124 = vsel %vm70, %v66, 0
    %v127 = vsel %vm70, %v67, 0
    %v130 = vsel %vm70, %v68, 0
    %132 = vmatprep.subr.mxu0 0.0
    %133 = vmatpush1.xpose.msra.mxu0 %v85
    %134 = vmatprep.subr.mxu0 0.0
    %135 = vmatpush1.xpose.msra.mxu0 %v88
    %136 = vmatprep.subr.mxu0 0.0
    %137 = vmatpush1.xpose.msra.mxu0 %v91
    %138 = vmatprep.subr.mxu0 0.0
    %139 = vmatpush1.xpose.msra.mxu0 %v94
    %140 = vmatprep.subr.mxu0 0.0
    %141 = vmatpush1.xpose.msra.mxu0 %v97
    %142 = vmatprep.subr.mxu0 0.0
    %143 = vmatpush1.xpose.msra.mxu0 %v100
    %144 = vmatprep.subr.mxu0 0.0
    %145 = vmatpush1.xpose.msra.mxu0 %v103
    %146 = vmatprep.subr.mxu0 0.0
    %147 = vmatpush1.xpose.msra.mxu0 %v106
    %148 = vmatprep.subr.mxu0 0.0
    %149 = vmatpush1.xpose.msra.mxu0 %v109
    %150 = vmatprep.subr.mxu0 0.0
    %151 = vmatpush1.xpose.msra.mxu0 %v112
    %152 = vmatprep.subr.mxu0 0.0
    %153 = vmatpush1.xpose.msra.mxu0 %v115
    %154 = vmatprep.subr.mxu0 0.0
    %155 = vmatpush1.xpose.msra.mxu0 %v118
    %156 = vmatprep.subr.mxu0 0.0
    %157 = vmatpush1.xpose.msra.mxu0 %v121
    %158 = vmatprep.subr.mxu0 0.0
    %159 = vmatpush1.xpose.msra.mxu0 %v124
    %160 = vmatprep.subr.mxu0 0.0
    %161 = vmatpush1.xpose.msra.mxu0 %v127
    %162 = vmatprep.subr.mxu0 0.0
    %163 = vmatpush1.xpose.msra.mxu0 %v130
    %164 = vmatprep.subr.mxu0 0.0
    %165 = vmatpush1.xpose.msra.mxu0 0.0
    %166 = vmatprep.subr.mxu0 0.0
    %167 = vmatpush1.xpose.msra.mxu0 0.0
    %168 = vmatprep.subr.mxu0 0.0
    %169 = vmatpush1.xpose.msra.mxu0 0.0
    %170 = vmatprep.subr.mxu0 0.0
    %171 = vmatpush1.xpose.msra.mxu0 0.0
    %172 = vmatprep.subr.mxu0 0.0
    %173 = vmatpush1.xpose.msra.mxu0 0.0
    %174 = vmatprep.subr.mxu0 0.0
    %175 = vmatpush1.xpose.msra.mxu0 0.0
    %176 = vmatprep.subr.mxu0 0.0
    %177 = vmatpush1.xpose.msra.mxu0 0.0
    %178 = vmatprep.subr.mxu0 0.0
    %179 = vmatpush1.xpose.msra.mxu0 0.0
    %180 = vmatprep.subr.mxu0 0.0
    %181 = vmatpush1.xpose.msra.mxu0 0.0
    %182 = vmatprep.subr.mxu0 0.0
    %183 = vmatpush1.xpose.msra.mxu0 0.0
    %184 = vmatprep.subr.mxu0 0.0
    %185 = vmatpush1.xpose.msra.mxu0 0.0
    %186 = vmatprep.subr.mxu0 0.0
    %187 = vmatpush1.xpose.msra.mxu0 0.0
    %188 = vmatprep.subr.mxu0 0.0
    %189 = vmatpush1.xpose.msra.mxu0 0.0
    %190 = vmatprep.subr.mxu0 0.0
    %191 = vmatpush1.xpose.msra.mxu0 0.0
    %192 = vmatprep.subr.mxu0 0.0
    %193 = vmatpush1.xpose.msra.mxu0 0.0
    %194 = vmatprep.subr.mxu0 0.0
    %195 = vmatpush1.xpose.msra.mxu0 0.0
    %196 = vmatprep.mubr.f32.mxu0 0.0
    %197 = vmatmul.mubr.f32.gmra.mrb[0].mxu0 %v82
    %v198 = vpop.f32.mrb[0].mxu0
    %v199 = vadd.f32 %v80, %v198
    %v200 = vpop.f32.mrb[0].mxu0
    %201 = vdwg.mxu0
    %v202 = vlaneseq
    %v203 = vshrl.u32 %v202, 7
    %v204 = vsub.s32 0, %v203
    %v205 = vrot.slane %v75, %v204
    %v206 = vmul.f32 %v73, %v205
    %v207 = vadd.f32 %v199, %v206
    %v208 = vmin.f32 %v207, 0.0
    %v209 = vmul.f32 %v208, 1.442695
    %v210 = vpow.pop %v209
    %211 = vmatprep.subr.mxu0 0.0
    %212 = vmatpush1.xpose.msra.mxu0 %v210
    %213 = vmatprep.subr.mxu0 0.0
    %214 = vmatpush1.xpose.msra.mxu0 0.0
    %215 = vmatprep.subr.mxu0 0.0
    %216 = vmatpush1.xpose.msra.mxu0 0.0
    %217 = vmatprep.subr.mxu0 0.0
    %218 = vmatpush1.xpose.msra.mxu0 0.0
    %219 = vmatprep.subr.mxu0 0.0
    %220 = vmatpush1.xpose.msra.mxu0 0.0
    %221 = vmatprep.subr.mxu0 0.0
    %222 = vmatpush1.xpose.msra.mxu0 0.0
    %223 = vmatprep.subr.mxu0 0.0
    %224 = vmatpush1.xpose.msra.mxu0 0.0
    %225 = vmatprep.subr.mxu0 0.0
    %226 = vmatpush1.xpose.msra.mxu0 0.0
    %227 = vmatprep.subr.mxu0 0.0
    %228 = vmatpush1.xpose.msra.mxu0 0.0
    %229 = vmatprep.subr.mxu0 0.0
    %230 = vmatpush1.xpose.msra.mxu0 0.0
    %231 = vmatprep.subr.mxu0 0.0
    %232 = vmatpush1.xpose.msra.mxu0 0.0
    %233 = vmatprep.subr.mxu0 0.0
    %234 = vmatpush1.xpose.msra.mxu0 0.0
    %235 = vmatprep.subr.mxu0 0.0
    %236 = vmatpush1.xpose.msra.mxu0 0.0
    %237 = vmatprep.subr.mxu0 0.0
    %238 = vmatpush1.xpose.msra.mxu0 0.0
    %239 = vmatprep.subr.mxu0 0.0
    %240 = vmatpush1.xpose.msra.mxu0 0.0
    %241 = vmatprep.subr.mxu0 0.0
    %242 = vmatpush1.xpose.msra.mxu0 0.0
    %243 = vmatprep.subr.mxu0 0.0
    %244 = vmatpush1.xpose.msra.mxu0 0.0
    %245 = vmatprep.subr.mxu0 0.0
    %246 = vmatpush1.xpose.msra.mxu0 0.0
    %247 = vmatprep.subr.mxu0 0.0
    %248 = vmatpush1.xpose.msra.mxu0 0.0
    %249 = vmatprep.subr.mxu0 0.0
    %250 = vmatpush1.xpose.msra.mxu0 0.0
    %251 = vmatprep.subr.mxu0 0.0
    %252 = vmatpush1.xpose.msra.mxu0 0.0
    %253 = vmatprep.subr.mxu0 0.0
    %254 = vmatpush1.xpose.msra.mxu0 0.0
    %255 = vmatprep.subr.mxu0 0.0
    %256 = vmatpush1.xpose.msra.mxu0 0.0
    %257 = vmatprep.subr.mxu0 0.0
    %258 = vmatpush1.xpose.msra.mxu0 0.0
    %259 = vmatprep.subr.mxu0 0.0
    %260 = vmatpush1.xpose.msra.mxu0 0.0
    %261 = vmatprep.subr.mxu0 0.0
    %262 = vmatpush1.xpose.msra.mxu0 0.0
    %263 = vmatprep.subr.mxu0 0.0
    %264 = vmatpush1.xpose.msra.mxu0 0.0
    %265 = vmatprep.subr.mxu0 0.0
    %266 = vmatpush1.xpose.msra.mxu0 0.0
    %267 = vmatprep.subr.mxu0 0.0
    %268 = vmatpush1.xpose.msra.mxu0 0.0
    %269 = vmatprep.subr.mxu0 0.0
    %270 = vmatpush1.xpose.msra.mxu0 0.0
    %271 = vmatprep.subr.mxu0 0.0
    %272 = vmatpush1.xpose.msra.mxu0 0.0
    %273 = vmatprep.subr.mxu0 0.0
    %274 = vmatpush1.xpose.msra.mxu0 0.0
    %275 = vmatprep.mubr.f32.mxu0 0.0
    %276 = vmatmul.mubr.f32.gmra.mrb[0].mxu0 %v76
    %v277 = vpop.f32.mrb[0].mxu0
    %v278 = vadd.f32 0.0, %v277
    %v279 = vpop.f32.mrb[0].mxu0
    %280 = vdwg.mxu0
    %vm281 = vcmask 57344
    %282 = vst.msk [vmem:[#allocation8] sm:$0x1] %vm281, %v278
    // Predicated region
    $region26: #{rbf_forward.1} parent=1 // pred_check
      _
    $region27: #{rbf_forward.1} parent=1 // pred_check_branch
      %284 = sbr.rel (0) target = $region29
    $region28: #{rbf_forward.1} parent=1 // pred_region
      %s286 = ssub.s32 16, 16
      %287 = vsyncadd [#allocation4], %s286
      %s289 = sshll.u32 [#allocation8], 4
      %s290 = int_to_ptr.vmem [resolvable:$true] %s289
      %292 = dma.vmem_to_hbm [thread:$0]  %s290, 16, %s3, [#allocation4]
    $region29: #{rbf_forward.1} parent=1 // pred_fallthru
      _
    // Predicated region
    $region30: #{rbf_forward.1} parent=1 // pred_check
      _
    $region31: #{rbf_forward.1} parent=1 // pred_check_branch
      %294 = sbr.rel (0) target = $region33
    $region32: #{rbf_forward.1} parent=1 // pred_region
      %295 = dma.done [#allocation4], 16
    $region33: #{rbf_forward.1} parent=1 // pred_fallthru
      _
    %296 = vsyncpa [#allocation3], 1
    %297 = vsyncpa [#allocation6], 1
    %298 = vsyncpa [#allocation4], 1

</llo_original>
